<compile_context>
chip_gen: v5e
topology: v5e:2x2
jax: 0.10.0
libtpu: 0.0.40
codegen_flags: <defaults>
</compile_context>

<pallas_src>
import functools

import jax
import jax.numpy as jnp
from jax.experimental import pallas as pl
from jax.experimental.pallas import tpu as pltpu


EMBED_DIM = 32          # self.embed_dim
HIDDEN2 = 16            # W_user_item_2 output
BN_EPS = 1e-5
PACK = 8                # batch rows packed per wide row (K = PACK*32 = 256)
K1 = PACK * EMBED_DIM   # 256: packed embedding / hidden width
K4 = PACK * HIDDEN2     # 128: packed layer-4 width


def graphrec_kernel(u_ref, i_ref, w1u_ref, w1i_ref, w23u_ref, w23i_ref,
                    w4_ref, w5_ref, vec_ref, out_ref):
    f32 = jnp.float32
    bf16 = jnp.bfloat16

    b1u = vec_ref[0:1, :]            # [1, 256]
    b1i = vec_ref[1:2, :]            # [1, 256]
    b23 = vec_ref[2:3, :]            # [1, 256]
    b4 = vec_ref[3:4, 0:K4]          # [1, 128]
    b5 = vec_ref[4:5, 0:1]           # [1, 1]

    u = u_ref[...].astype(bf16)      # [R, 256]  (8 packed user rows / wide row)
    v = i_ref[...].astype(bf16)      # [R, 256]

    # relu(bn1/bn2(W_{user,item}_rating_1(.)))  -- BN folded, 8-block blockdiag
    hu = jnp.maximum(
        jnp.dot(u, w1u_ref[...], preferred_element_type=f32) + b1u, 0.0)
    hi = jnp.maximum(
        jnp.dot(v, w1i_ref[...], preferred_element_type=f32) + b1i, 0.0)
    # F.dropout == identity in eval mode.

    # layers 2+3 folded: W23_* = W_*_rating_2 @ W_user_item_1 block, BN3 folded.
    h = (jnp.dot(hu.astype(bf16), w23u_ref[...], preferred_element_type=f32)
         + jnp.dot(hi.astype(bf16), w23i_ref[...], preferred_element_type=f32)
         + b23)
    h = jnp.maximum(h, 0.0)

    # relu(bn4(W_user_item_2(.)))  -- BN folded
    h = jnp.dot(h.astype(bf16), w4_ref[...], preferred_element_type=f32) + b4
    h = jnp.maximum(h, 0.0)          # [R, 128] f32

    # W_user_item_3 (16 -> 1) for all PACK packed rows at once, Q@K^T style:
    #   out[k, r] = sum_c w5sel[k, c] * h[r, c]
    # This fuses the w5 multiply, the 16-wide segmented reduce and the
    # sublane->lane layout change; the result is a lane-dense [PACK, R] block.
    out_ref[...] = (jnp.einsum("kc,rc->kr", w5_ref[...], h.astype(bf16),
                               preferred_element_type=f32) + b5)


def _cdiv(a, m):
    return -(-a // m)


def _round_up(x, m):
    return _cdiv(x, m) * m


def _choose_tile(b, block_rows):
    """Pick (tile_rows, padded_batch). Tiles are multiples of 1024 rows so the
    packed input block ((tb/8, 256)) and output block ((8, tb/8)) stay
    (8,128)-aligned; small batches use a single full-array tile (pad <= 127)."""
    b128 = _round_up(max(b, 1), 128)
    if b128 <= 4096:
        return b128, b128
    n_steps = max(2, _cdiv(b128, block_rows))   # >=2 steps: keep both v7x TCs busy
    tb = _round_up(_cdiv(b128, n_steps), 1024)
    b_pad = _round_up(b128, tb)
    return tb, b_pad


@functools.partial(jax.jit, static_argnames=("block_rows",))
def graphrec_forward(user_emb, item_emb, fused, block_rows=8192):
    """user_emb, item_emb: [B, EMBED_DIM] -> predicted_score: [B] f32."""
    w1u, w1i, w23u, w23i, w4, w5sel, vec = fused
    b = user_emb.shape[0]

    tb, b_pad = _choose_tile(b, block_rows)
    if b_pad != b:
        pad = ((0, b_pad - b), (0, 0))
        user_emb = jnp.pad(user_emb, pad)
        item_emb = jnp.pad(item_emb, pad)

    # Free row-major reshapes: 8 batch rows per 256-lane wide row. No concat,
    # no extra HBM pass (dtype cast happens in-kernel on the VMEM tile).
    u = user_emb.reshape(b_pad // PACK, K1)
    it = item_emb.reshape(b_pad // PACK, K1)

    rows = tb // PACK
    out = pl.pallas_call(
        graphrec_kernel,
        out_shape=jax.ShapeDtypeStruct((PACK, b_pad // PACK), jnp.float32),
        grid=(b_pad // tb,),
        in_specs=[
            pl.BlockSpec((rows, K1), lambda i: (i, 0)),     # user stream (tiled)
            pl.BlockSpec((rows, K1), lambda i: (i, 0)),     # item stream (tiled)
            pl.BlockSpec(w1u.shape, lambda i: (0, 0)),      # weights: VMEM-resident
            pl.BlockSpec(w1i.shape, lambda i: (0, 0)),
            pl.BlockSpec(w23u.shape, lambda i: (0, 0)),
            pl.BlockSpec(w23i.shape, lambda i: (0, 0)),
            pl.BlockSpec(w4.shape, lambda i: (0, 0)),
            pl.BlockSpec(w5sel.shape, lambda i: (0, 0)),
            pl.BlockSpec(vec.shape, lambda i: (0, 0)),      # packed biases slab
        ],
        out_specs=pl.BlockSpec((PACK, rows), lambda i: (0, i)),
        compiler_params=pltpu.CompilerParams(dimension_semantics=("parallel",)),
    )(u, it, w1u, w1i, w23u, w23i, w4, w5sel, vec)

    # out[k, g] = score of batch row PACK*g + k  ->  flatten in batch order.
    return out.T.reshape(-1)[:b]


# ----------------------------------------------------------------------------
# Parameter construction (PyTorch-default init) and eval-mode fusion.
# ----------------------------------------------------------------------------

def _linear_params(key, in_dim, out_dim):
    """nn.Linear default init: U(-1/sqrt(in), 1/sqrt(in)); W stored [in, out]."""
    kw, kb = jax.random.split(key)
    bound = 1.0 / jnp.sqrt(jnp.float32(in_dim))
    w = jax.random.uniform(kw, (in_dim, out_dim), jnp.float32, -bound, bound)
    b = jax.random.uniform(kb, (out_dim,), jnp.float32, -bound, bound)
    return w, b


def _bn_eval_scale_shift(dim):
    """BatchNorm1d eval with default state (gamma=1, beta=0, mean=0, var=1)."""
    gamma = jnp.ones((dim,), jnp.float32)
    beta = jnp.zeros((dim,), jnp.float32)
    running_mean = jnp.zeros((dim,), jnp.float32)
    running_var = jnp.ones((dim,), jnp.float32)
    scale = gamma / jnp.sqrt(running_var + BN_EPS)
    shift = beta - running_mean * scale
    return scale, shift


def init_graphrec_params(key):
    keys = jax.random.split(key, 7)
    p = {}
    p["w_ur1"], p["b_ur1"] = _linear_params(keys[0], EMBED_DIM, EMBED_DIM)
    p["w_ur2"], p["b_ur2"] = _linear_params(keys[1], EMBED_DIM, EMBED_DIM)
    p["w_ir1"], p["b_ir1"] = _linear_params(keys[2], EMBED_DIM, EMBED_DIM)
    p["w_ir2"], p["b_ir2"] = _linear_params(keys[3], EMBED_DIM, EMBED_DIM)
    p["w_ui1"], p["b_ui1"] = _linear_params(keys[4], 2 * EMBED_DIM, EMBED_DIM)
    p["w_ui2"], p["b_ui2"] = _linear_params(keys[5], EMBED_DIM, HIDDEN2)
    p["w_ui3"], p["b_ui3"] = _linear_params(keys[6], HIDDEN2, 1)
    return p


def _blockdiag(w, n):
    din, dout = w.shape
    out = jnp.zeros((n * din, n * dout), jnp.float32)
    for k in range(n):
        out = out.at[k * din:(k + 1) * din, k * dout:(k + 1) * dout].set(w)
    return out


def fuse_graphrec_params(p, dtype=jnp.bfloat16):
    """Eval-mode fusion: fold BN into the linears, fold layer 2 into layer 3,
    build 8-block blockdiag weights (bf16) and one f32 bias slab."""
    d, h2 = EMBED_DIM, HIDDEN2
    s1, t1 = _bn_eval_scale_shift(d)
    s2, t2 = _bn_eval_scale_shift(d)
    s3, t3 = _bn_eval_scale_shift(d)
    s4, t4 = _bn_eval_scale_shift(h2)

    # layer 1 per branch, BN1/BN2 folded
    w1u = p["w_ur1"] * s1[None, :]
    b1u = p["b_ur1"] * s1 + t1
    w1i = p["w_ir1"] * s2[None, :]
    b1i = p["b_ir1"] * s2 + t2

    # layers 2+3 folded (no nonlinearity between them in eval), BN3 folded
    w3u, w3i = p["w_ui1"][:d], p["w_ui1"][d:]
    w23u = (p["w_ur2"] @ w3u) * s3[None, :]
    w23i = (p["w_ir2"] @ w3i) * s3[None, :]
    b23 = (p["b_ur2"] @ w3u + p["b_ir2"] @ w3i + p["b_ui1"]) * s3 + t3

    # layer 4, BN4 folded
    w4 = p["w_ui2"] * s4[None, :]
    b4 = p["b_ui2"] * s4 + t4

    # layer 5 selection matrix: w5sel[k, k*16:(k+1)*16] = W_user_item_3 row
    w5 = p["w_ui3"][:, 0]
    w5sel = jnp.zeros((PACK, K4), jnp.float32)
    for k in range(PACK):
        w5sel = w5sel.at[k, k * h2:(k + 1) * h2].set(w5)
    b5 = p["b_ui3"][0]

    W1u = _blockdiag(w1u, PACK).astype(dtype)    # [256, 256]
    W1i = _blockdiag(w1i, PACK).astype(dtype)    # [256, 256]
    W23u = _blockdiag(w23u, PACK).astype(dtype)  # [256, 256]
    W23i = _blockdiag(w23i, PACK).astype(dtype)  # [256, 256]
    W4 = _blockdiag(w4, PACK).astype(dtype)      # [256, 128]
    W5 = w5sel.astype(dtype)                     # [8, 128]

    vec = jnp.zeros((8, K1), jnp.float32)        # [8, 256] f32 slab (one DMA)
    vec = vec.at[0, :].set(jnp.tile(b1u, PACK))
    vec = vec.at[1, :].set(jnp.tile(b1i, PACK))
    vec = vec.at[2, :].set(jnp.tile(b23, PACK))
    vec = vec.at[3, 0:K4].set(jnp.tile(b4, PACK))
    vec = vec.at[4, 0].set(b5)
    return (W1u, W1i, W23u, W23i, W4, W5, vec)


if __name__ == "__main__":
    key = jax.random.PRNGKey(0)
    k_params, k_utab, k_itab, k_uidx, k_iidx = jax.random.split(key, 5)

    params = init_graphrec_params(k_params)
    fused = fuse_graphrec_params(params)

    num_users, num_items, batch = 20, 30, 8
    user_table = jax.random.normal(k_utab, (num_users, EMBED_DIM), jnp.float32)
    item_table = jax.random.normal(k_itab, (num_items, EMBED_DIM), jnp.float32)
    nodes_user = jax.random.randint(k_uidx, (batch,), 0, num_users)
    nodes_item = jax.random.randint(k_iidx, (batch,), 0, num_items)

    user_emb = user_table[nodes_user]   # [B, 32]
    item_emb = item_table[nodes_item]   # [B, 32]

    scores = graphrec_forward(user_emb, item_emb, fused)
    jax.block_until_ready(scores)

    # Pure-JAX f32 reference following the original (unfused) module exactly.
    s1, t1 = _bn_eval_scale_shift(EMBED_DIM)
    s2, t2 = _bn_eval_scale_shift(EMBED_DIM)
    s3, t3 = _bn_eval_scale_shift(EMBED_DIM)
    s4, t4 = _bn_eval_scale_shift(HIDDEN2)
    xu = jnp.maximum((user_emb @ params["w_ur1"] + params["b_ur1"]) * s1 + t1, 0.0)
    xu = xu @ params["w_ur2"] + params["b_ur2"]
    xi = jnp.maximum((item_emb @ params["w_ir1"] + params["b_ir1"]) * s2 + t2, 0.0)
    xi = xi @ params["w_ir2"] + params["b_ir2"]
    xc = jnp.concatenate([xu, xi], axis=1)
    x = jnp.maximum((xc @ params["w_ui1"] + params["b_ui1"]) * s3 + t3, 0.0)
    x = jnp.maximum((x @ params["w_ui2"] + params["b_ui2"]) * s4 + t4, 0.0)
    ref = (x @ params["w_ui3"] + params["b_ui3"])[:, 0]

    assert scores.shape == (batch,)
    # bf16 matmul operands (f32 accumulation): loosened tolerance vs. f32 ref.
    assert jnp.allclose(scores, ref, atol=5e-2, rtol=5e-2), (
        float(jnp.max(jnp.abs(scores - ref))))
    print("KERNEL_OK")
</pallas_src>

<mosaic_0001>
module attributes {stable_mosaic.version = 11 : i64} {
  func.func @graphrec_kernel(%arg0: i32, %arg1: memref<16x256xf32, #tpu.memory_space<vmem>>, %arg2: memref<16x256xf32, #tpu.memory_space<vmem>>, %arg3: memref<256x256xbf16, #tpu.memory_space<vmem>>, %arg4: memref<256x256xbf16, #tpu.memory_space<vmem>>, %arg5: memref<256x256xbf16, #tpu.memory_space<vmem>>, %arg6: memref<256x256xbf16, #tpu.memory_space<vmem>>, %arg7: memref<256x128xbf16, #tpu.memory_space<vmem>>, %arg8: memref<8x128xbf16, #tpu.memory_space<vmem>>, %arg9: memref<8x256xf32, #tpu.memory_space<vmem>>, %arg10: memref<8x16xf32, #tpu.memory_space<vmem>>) attributes {dimension_semantics = [#tpu.dimension_semantics<parallel>], iteration_bounds = array<i64: 1>, scalar_prefetch = 0 : i64, scratch_operands = 0 : i64, tpu.core_type = #tpu.core_type<tc>, window_params = [{transform_indices = @transform_0, window_bounds = array<i64: 16, 256>}, {transform_indices = @transform_1, window_bounds = array<i64: 16, 256>}, {pipeline_mode = #tpu.pipeline_mode<synchronous>, transform_indices = @transform_2, window_bounds = array<i64: 256, 256>}, {pipeline_mode = #tpu.pipeline_mode<synchronous>, transform_indices = @transform_3, window_bounds = array<i64: 256, 256>}, {pipeline_mode = #tpu.pipeline_mode<synchronous>, transform_indices = @transform_4, window_bounds = array<i64: 256, 256>}, {pipeline_mode = #tpu.pipeline_mode<synchronous>, transform_indices = @transform_5, window_bounds = array<i64: 256, 256>}, {pipeline_mode = #tpu.pipeline_mode<synchronous>, transform_indices = @transform_6, window_bounds = array<i64: 256, 128>}, {pipeline_mode = #tpu.pipeline_mode<synchronous>, transform_indices = @transform_7, window_bounds = array<i64: 8, 128>}, {pipeline_mode = #tpu.pipeline_mode<synchronous>, transform_indices = @transform_8, window_bounds = array<i64: 8, 256>}, {transform_indices = @transform_9, window_bounds = array<i64: 8, 16>}]} {
    %c0 = arith.constant 0 : index
    %c0_0 = arith.constant 0 : index
    %0 = vector.load %arg9[%c0, %c0_0] : memref<8x256xf32, #tpu.memory_space<vmem>>, vector<1x256xf32>
    %c1 = arith.constant 1 : index
    %c0_1 = arith.constant 0 : index
    %1 = vector.load %arg9[%c1, %c0_1] : memref<8x256xf32, #tpu.memory_space<vmem>>, vector<1x256xf32>
    %c2 = arith.constant 2 : index
    %c0_2 = arith.constant 0 : index
    %2 = vector.load %arg9[%c2, %c0_2] : memref<8x256xf32, #tpu.memory_space<vmem>>, vector<1x256xf32>
    %c3 = arith.constant 3 : index
    %c0_3 = arith.constant 0 : index
    %3 = vector.load %arg9[%c3, %c0_3] : memref<8x256xf32, #tpu.memory_space<vmem>>, vector<1x128xf32>
    %c4 = arith.constant 4 : index
    %c0_4 = arith.constant 0 : index
    %4 = vector.load %arg9[%c4, %c0_4] : memref<8x256xf32, #tpu.memory_space<vmem>>, vector<1x1xf32>
    %c0_5 = arith.constant 0 : index
    %c0_6 = arith.constant 0 : index
    %5 = vector.load %arg1[%c0_5, %c0_6] : memref<16x256xf32, #tpu.memory_space<vmem>>, vector<16x256xf32>
    %6 = arith.truncf %5 : vector<16x256xf32> to vector<16x256xbf16>
    %c0_7 = arith.constant 0 : index
    %c0_8 = arith.constant 0 : index
    %7 = vector.load %arg2[%c0_7, %c0_8] : memref<16x256xf32, #tpu.memory_space<vmem>>, vector<16x256xf32>
    %8 = arith.truncf %7 : vector<16x256xf32> to vector<16x256xbf16>
    %c0_9 = arith.constant 0 : index
    %c0_10 = arith.constant 0 : index
    %9 = vector.load %arg3[%c0_9, %c0_10] : memref<256x256xbf16, #tpu.memory_space<vmem>>, vector<256x256xbf16>
    %cst = arith.constant dense<0.000000e+00> : vector<16x256xf32>
    %10 = tpu.matmul %6, %9, %cst {dimension_numbers = #tpu.dot_dimension_numbers<[1], [0], [0], [1], [0, 0, 1, 1], [], []>} : vector<16x256xbf16>, vector<256x256xbf16>, vector<16x256xf32> -> vector<16x256xf32>
    %11 = vector.broadcast %0 : vector<1x256xf32> to vector<16x256xf32>
    %12 = arith.addf %10, %11 : vector<16x256xf32>
    %cst_11 = arith.constant 0.000000e+00 : f32
    %13 = vector.broadcast %cst_11 : f32 to vector<16x256xf32>
    %14 = arith.maximumf %12, %13 : vector<16x256xf32>
    %c0_12 = arith.constant 0 : index
    %c0_13 = arith.constant 0 : index
    %15 = vector.load %arg4[%c0_12, %c0_13] : memref<256x256xbf16, #tpu.memory_space<vmem>>, vector<256x256xbf16>
    %cst_14 = arith.constant dense<0.000000e+00> : vector<16x256xf32>
    %16 = tpu.matmul %8, %15, %cst_14 {dimension_numbers = #tpu.dot_dimension_numbers<[1], [0], [0], [1], [0, 0, 1, 1], [], []>} : vector<16x256xbf16>, vector<256x256xbf16>, vector<16x256xf32> -> vector<16x256xf32>
    %17 = vector.broadcast %1 : vector<1x256xf32> to vector<16x256xf32>
    %18 = arith.addf %16, %17 : vector<16x256xf32>
    %cst_15 = arith.constant 0.000000e+00 : f32
    %19 = vector.broadcast %cst_15 : f32 to vector<16x256xf32>
    %20 = arith.maximumf %18, %19 : vector<16x256xf32>
    %21 = arith.truncf %14 : vector<16x256xf32> to vector<16x256xbf16>
    %c0_16 = arith.constant 0 : index
    %c0_17 = arith.constant 0 : index
    %22 = vector.load %arg5[%c0_16, %c0_17] : memref<256x256xbf16, #tpu.memory_space<vmem>>, vector<256x256xbf16>
    %cst_18 = arith.constant dense<0.000000e+00> : vector<16x256xf32>
    %23 = tpu.matmul %21, %22, %cst_18 {dimension_numbers = #tpu.dot_dimension_numbers<[1], [0], [0], [1], [0, 0, 1, 1], [], []>} : vector<16x256xbf16>, vector<256x256xbf16>, vector<16x256xf32> -> vector<16x256xf32>
    %24 = arith.truncf %20 : vector<16x256xf32> to vector<16x256xbf16>
    %c0_19 = arith.constant 0 : index
    %c0_20 = arith.constant 0 : index
    %25 = vector.load %arg6[%c0_19, %c0_20] : memref<256x256xbf16, #tpu.memory_space<vmem>>, vector<256x256xbf16>
    %cst_21 = arith.constant dense<0.000000e+00> : vector<16x256xf32>
    %26 = tpu.matmul %24, %25, %cst_21 {dimension_numbers = #tpu.dot_dimension_numbers<[1], [0], [0], [1], [0, 0, 1, 1], [], []>} : vector<16x256xbf16>, vector<256x256xbf16>, vector<16x256xf32> -> vector<16x256xf32>
    %27 = arith.addf %23, %26 : vector<16x256xf32>
    %28 = vector.broadcast %2 : vector<1x256xf32> to vector<16x256xf32>
    %29 = arith.addf %27, %28 : vector<16x256xf32>
    %cst_22 = arith.constant 0.000000e+00 : f32
    %30 = vector.broadcast %cst_22 : f32 to vector<16x256xf32>
    %31 = arith.maximumf %29, %30 : vector<16x256xf32>
    %32 = arith.truncf %31 : vector<16x256xf32> to vector<16x256xbf16>
    %c0_23 = arith.constant 0 : index
    %c0_24 = arith.constant 0 : index
    %33 = vector.load %arg7[%c0_23, %c0_24] : memref<256x128xbf16, #tpu.memory_space<vmem>>, vector<256x128xbf16>
    %cst_25 = arith.constant dense<0.000000e+00> : vector<16x128xf32>
    %34 = tpu.matmul %32, %33, %cst_25 {dimension_numbers = #tpu.dot_dimension_numbers<[1], [0], [0], [1], [0, 0, 1, 1], [], []>} : vector<16x256xbf16>, vector<256x128xbf16>, vector<16x128xf32> -> vector<16x128xf32>
    %35 = vector.broadcast %3 : vector<1x128xf32> to vector<16x128xf32>
    %36 = arith.addf %34, %35 : vector<16x128xf32>
    %cst_26 = arith.constant 0.000000e+00 : f32
    %37 = vector.broadcast %cst_26 : f32 to vector<16x128xf32>
    %38 = arith.maximumf %36, %37 : vector<16x128xf32>
    %c0_27 = arith.constant 0 : index
    %c0_28 = arith.constant 0 : index
    %39 = vector.load %arg8[%c0_27, %c0_28] : memref<8x128xbf16, #tpu.memory_space<vmem>>, vector<8x128xbf16>
    %40 = arith.truncf %38 : vector<16x128xf32> to vector<16x128xbf16>
    "tpu.trace_start"() <{level = 10 : i32, message = "kc,rc->kr"}> : () -> ()
    %cst_29 = arith.constant dense<0.000000e+00> : vector<8x16xf32>
    %41 = tpu.matmul %39, %40, %cst_29 {dimension_numbers = #tpu.dot_dimension_numbers<[1], [1], [0], [0], [0, 0, 1, 0], [], []>} : vector<8x128xbf16>, vector<16x128xbf16>, vector<8x16xf32> -> vector<8x16xf32>
    "tpu.trace_stop"() : () -> ()
    %42 = vector.broadcast %4 : vector<1x1xf32> to vector<8x16xf32>
    %43 = arith.addf %41, %42 : vector<8x16xf32>
    %c0_30 = arith.constant 0 : index
    %c0_31 = arith.constant 0 : index
    %44 = vector.load %arg10[%c0_30, %c0_31] : memref<8x16xf32, #tpu.memory_space<vmem>>, vector<8x16xf32>
    tpu.vector_store %arg10[%c0_30, %c0_31], %43 {strides = array<i32>} : memref<8x16xf32, #tpu.memory_space<vmem>>, vector<8x16xf32>,
    return
  }
  func.func @transform_0(%arg0: i32) -> (i32, i32) {
    %c0_i32 = arith.constant 0 : i32
    %c0_i32_0 = arith.constant 0 : i32
    return %arg0, %c0_i32 : i32, i32
  }
  func.func @transform_1(%arg0: i32) -> (i32, i32) {
    %c0_i32 = arith.constant 0 : i32
    %c0_i32_0 = arith.constant 0 : i32
    return %arg0, %c0_i32 : i32, i32
  }
  func.func @transform_2(%arg0: i32) -> (i32, i32) {
    %c0_i32 = arith.constant 0 : i32
    %c0_i32_0 = arith.constant 0 : i32
    %c0_i32_1 = arith.constant 0 : i32
    return %c0_i32, %c0_i32_0 : i32, i32
  }
  func.func @transform_3(%arg0: i32) -> (i32, i32) {
    %c0_i32 = arith.constant 0 : i32
    %c0_i32_0 = arith.constant 0 : i32
    %c0_i32_1 = arith.constant 0 : i32
    return %c0_i32, %c0_i32_0 : i32, i32
  }
  func.func @transform_4(%arg0: i32) -> (i32, i32) {
    %c0_i32 = arith.constant 0 : i32
    %c0_i32_0 = arith.constant 0 : i32
    %c0_i32_1 = arith.constant 0 : i32
    return %c0_i32, %c0_i32_0 : i32, i32
  }
  func.func @transform_5(%arg0: i32) -> (i32, i32) {
    %c0_i32 = arith.constant 0 : i32
    %c0_i32_0 = arith.constant 0 : i32
    %c0_i32_1 = arith.constant 0 : i32
    return %c0_i32, %c0_i32_0 : i32, i32
  }
  func.func @transform_6(%arg0: i32) -> (i32, i32) {
    %c0_i32 = arith.constant 0 : i32
    %c0_i32_0 = arith.constant 0 : i32
    %c0_i32_1 = arith.constant 0 : i32
    return %c0_i32, %c0_i32_0 : i32, i32
  }
  func.func @transform_7(%arg0: i32) -> (i32, i32) {
    %c0_i32 = arith.constant 0 : i32
    %c0_i32_0 = arith.constant 0 : i32
    %c0_i32_1 = arith.constant 0 : i32
    return %c0_i32, %c0_i32_0 : i32, i32
  }
  func.func @transform_8(%arg0: i32) -> (i32, i32) {
    %c0_i32 = arith.constant 0 : i32
    %c0_i32_0 = arith.constant 0 : i32
    %c0_i32_1 = arith.constant 0 : i32
    return %c0_i32, %c0_i32_0 : i32, i32
  }
  func.func @transform_9(%arg0: i32) -> (i32, i32) {
    %c0_i32 = arith.constant 0 : i32
    %c0_i32_0 = arith.constant 0 : i32
    return %c0_i32, %arg0 : i32, i32
  }
}

</mosaic_0001>

<llo_original>
// kernel: graphrec_forward.1
$region0: #{graphrec_forward.1}
  #allocation0 [shape = 'u32[]', space=smem, size = 0x4, offset = 0x4, fixed_abs, tag = 'smem constant byte address 0x4 - core index']
  #allocation1 [shape = 'u32[72,128]{1,0:T(1,128)}', space=vmem, size = 0x9000, scoped, tag = 'internal scratch']
  %s0 = inlined_call_operand.vmem [shape: f32[16,256], index: 0, kind: input, shape index: {}]
  %s1 = inlined_call_operand.vmem [shape: f32[16,256], index: 1, kind: input, shape index: {}]
  %s2 = inlined_call_operand.vmem [shape: bf16[256,256], index: 2, kind: input, shape index: {}]
  %s3 = inlined_call_operand.vmem [shape: bf16[256,256], index: 3, kind: input, shape index: {}]
  %s4 = inlined_call_operand.hbm [shape: bf16[256,256], index: 4, kind: input, shape index: {}]
  %s5 = inlined_call_operand.hbm [shape: bf16[256,256], index: 5, kind: input, shape index: {}]
  %s6 = inlined_call_operand.hbm [shape: bf16[256,128], index: 6, kind: input, shape index: {}]
  %s7 = inlined_call_operand.vmem [shape: bf16[8,128], index: 7, kind: input, shape index: {}]
  %s8 = inlined_call_operand.vmem [shape: f32[8,256], index: 8, kind: input, shape index: {}]
  %s9 = inlined_call_operand.vmem [shape: f32[8,16], index: 9, kind: output, shape index: {}]
  %s10 = sld [smem:[#allocation0]]
  $region58: #{graphrec_forward.1} parent=0
    _
  %s12 = ssub.s32 1, %s10
  %s13 = scalar_select 0, %s12, %s10
  $region1: #{graphrec_forward.1} parent=0
    #allocation2 [shape = 'u8[131072]{0}', space=vmem, size = 0x20000, scoped, tag = 'input window, operand 4, single buffered']
    #allocation3 [shape = 's32[1]{0}', space=sflag, size = 0x4, scoped, tag = 'scoped memory for graphrec_forward.1']
    #allocation4 [shape = 'u8[131072]{0}', space=vmem, size = 0x20000, scoped, tag = 'input window, operand 5, single buffered']
    #allocation5 [shape = 's32[1]{0}', space=sflag, size = 0x4, scoped, tag = 'scoped memory for graphrec_forward.1']
    #allocation6 [shape = 'u8[65536]{0}', space=vmem, size = 0x10000, scoped, tag = 'input window, operand 6, single buffered']
    %14 = vsyncpa [#allocation3], 0
    %15 = vsyncpa [#allocation5], 0
    // Predicated region
    $region2: #{graphrec_forward.1} parent=1 // pred_check
      _
    $region3: #{graphrec_forward.1} parent=1 // pred_check_branch
      %17 = sbr.rel (0) target = $region5
    $region4: #{graphrec_forward.1} parent=1 // pred_region
      _
    $region5: #{graphrec_forward.1} parent=1 // pred_fallthru
      _
    // Predicated region
    $region6: #{graphrec_forward.1} parent=1 // pred_check
      _
    $region7: #{graphrec_forward.1} parent=1 // pred_check_branch
      %19 = sbr.rel (0) target = $region9
    $region8: #{graphrec_forward.1} parent=1 // pred_region
      _
    $region9: #{graphrec_forward.1} parent=1 // pred_fallthru
      _
    // Predicated region
    $region10: #{graphrec_forward.1} parent=1 // pred_check
      _
    $region11: #{graphrec_forward.1} parent=1 // pred_check_branch
      %21 = sbr.rel (0) target = $region13
    $region12: #{graphrec_forward.1} parent=1 // pred_region
      _
    $region13: #{graphrec_forward.1} parent=1 // pred_fallthru
      _
    // Predicated region
    $region14: #{graphrec_forward.1} parent=1 // pred_check
      _
    $region15: #{graphrec_forward.1} parent=1 // pred_check_branch
      %23 = sbr.rel (0) target = $region17
    $region16: #{graphrec_forward.1} parent=1 // pred_region
      _
    $region17: #{graphrec_forward.1} parent=1 // pred_fallthru
      _
    // Predicated region
    $region18: #{graphrec_forward.1} parent=1 // pred_check
      _
    $region19: #{graphrec_forward.1} parent=1 // pred_check_branch
      %25 = sbr.rel (0) target = $region21
    $region20: #{graphrec_forward.1} parent=1 // pred_region
      %27 = vsyncadd [#allocation3], 0
      %s28 = sshll.u32 %s4, 4
      %s29 = int_to_ptr.hbm [resolvable:$true] %s28
      %s30 = sshll.u32 [#allocation2], 4
      %s31 = int_to_ptr.vmem [resolvable:$true] %s30
      %36 = dma.hbm_to_vmem [thread:$0]  %s29, 4096, %s31, [#allocation3], 128, 128, 8
    $region21: #{graphrec_forward.1} parent=1 // pred_fallthru
      _
    // Predicated region
    $region22: #{graphrec_forward.1} parent=1 // pred_check
      _
    $region23: #{graphrec_forward.1} parent=1 // pred_check_branch
      %38 = sbr.rel (0) target = $region25
    $region24: #{graphrec_forward.1} parent=1 // pred_region
      %40 = vsyncadd [#allocation5], 0
      %s41 = sshll.u32 %s5, 4
      %s42 = int_to_ptr.hbm [resolvable:$true] %s41
      %s43 = sshll.u32 [#allocation4], 4
      %s44 = int_to_ptr.vmem [resolvable:$true] %s43
      %49 = dma.hbm_to_vmem [thread:$0]  %s42, 4096, %s44, [#allocation5], 128, 128, 8
    $region25: #{graphrec_forward.1} parent=1 // pred_fallthru
      _
    // Predicated region
    $region26: #{graphrec_forward.1} parent=1 // pred_check
      _
    $region27: #{graphrec_forward.1} parent=1 // pred_check_branch
      %51 = sbr.rel (0) target = $region29
    $region28: #{graphrec_forward.1} parent=1 // pred_region
      %53 = vsyncadd [#allocation5], 0
      %s54 = sshll.u32 %s6, 4
      %s55 = int_to_ptr.hbm [resolvable:$true] %s54
      %s56 = sshll.u32 [#allocation6], 4
      %s57 = int_to_ptr.vmem [resolvable:$true] %s56
      %62 = dma.hbm_to_vmem [thread:$0]  %s55, 2048, %s57, [#allocation5], 64, 64, 4
    $region29: #{graphrec_forward.1} parent=1 // pred_fallthru
      _
    // Predicated region
    $region30: #{graphrec_forward.1} parent=1 // pred_check
      _
    $region31: #{graphrec_forward.1} parent=1 // pred_check_branch
      %64 = sbr.rel (0) target = $region33
    $region32: #{graphrec_forward.1} parent=1 // pred_region
      _
    $region33: #{graphrec_forward.1} parent=1 // pred_fallthru
      _
    // Predicated region
    $region34: #{graphrec_forward.1} parent=1 // pred_check
      _
    $region35: #{graphrec_forward.1} parent=1 // pred_check_branch
      %66 = sbr.rel (0) target = $region37
    $region36: #{graphrec_forward.1} parent=1 // pred_region
      _
    $region37: #{graphrec_forward.1} parent=1 // pred_fallthru
      _
    // Predicated region
    $region38: #{graphrec_forward.1} parent=1 // pred_check
      _
    $region39: #{graphrec_forward.1} parent=1 // pred_check_branch
      %68 = sbr.rel (0) target = $region41
    $region40: #{graphrec_forward.1} parent=1 // pred_region
      %70 = dma.done [#allocation3], 4096
    $region41: #{graphrec_forward.1} parent=1 // pred_fallthru
      _
    // Predicated region
    $region42: #{graphrec_forward.1} parent=1 // pred_check
      _
    $region43: #{graphrec_forward.1} parent=1 // pred_check_branch
      %72 = sbr.rel (0) target = $region45
    $region44: #{graphrec_forward.1} parent=1 // pred_region
      %74 = dma.done [#allocation5], 4096
    $region45: #{graphrec_forward.1} parent=1 // pred_fallthru
      _
    // Predicated region
    $region46: #{graphrec_forward.1} parent=1 // pred_check
      _
    $region47: #{graphrec_forward.1} parent=1 // pred_check_branch
      %76 = sbr.rel (0) target = $region49
    $region48: #{graphrec_forward.1} parent=1 // pred_region
      %78 = dma.done [#allocation5], 2048
    $region49: #{graphrec_forward.1} parent=1 // pred_fallthru
      _
    %v80 = vld [vmem:[%s8] ss:$8 sm:$0x3]
    %s81 = scalar_lea.vmem %s8, 1
    %v82 = vld [vmem:[%s81] ss:$8 sm:$0x3]
    %s83 = scalar_lea.vmem %s8, 2
    %v84 = vld [vmem:[%s83] ss:$8 sm:$0x3]
    %v85 = vld [vmem:[%s8 + $0x3] ss:$0 sm:$0xff]
    %v86 = vld [vmem:[%s8 + $0x4] ss:$0 sm:$0xff]
    %v87 = vld [vmem:[%s0] sm:$0xff]
    %v88 = vld [vmem:[%s0 + $0x8] sm:$0xff]
    %v89 = vld [vmem:[%s0 + $0x10] sm:$0xff]
    %v90 = vld [vmem:[%s0 + $0x18] sm:$0xff]
    %v91 = vpack.c.bf16 %v89, %v87
    %v92 = vpack.c.bf16 %v90, %v88
    %v93 = vld [vmem:[%s1] sm:$0xff]
    %v94 = vld [vmem:[%s1 + $0x8] sm:$0xff]
    %v95 = vld [vmem:[%s1 + $0x10] sm:$0xff]
    %v96 = vld [vmem:[%s1 + $0x18] sm:$0xff]
    %v97 = vpack.c.bf16 %v95, %v93
    %v98 = vpack.c.bf16 %v96, %v94
    %v99 = vld [vmem:[%s2] sm:$0xff]
    %v100 = vld [vmem:[%s2 + $0x8] sm:$0xff]
    %v101 = vld [vmem:[%s2 + $0x10] sm:$0xff]
    %v102 = vld [vmem:[%s2 + $0x18] sm:$0xff]
    %v103 = vld [vmem:[%s2 + $0x20] sm:$0xff]
    %v104 = vld [vmem:[%s2 + $0x28] sm:$0xff]
    %v105 = vld [vmem:[%s2 + $0x30] sm:$0xff]
    %v106 = vld [vmem:[%s2 + $0x38] sm:$0xff]
    %v107 = vld [vmem:[%s2 + $0x40] sm:$0xff]
    %v108 = vld [vmem:[%s2 + $0x48] sm:$0xff]
    %v109 = vld [vmem:[%s2 + $0x50] sm:$0xff]
    %v110 = vld [vmem:[%s2 + $0x58] sm:$0xff]
    %v111 = vld [vmem:[%s2 + $0x60] sm:$0xff]
    %v112 = vld [vmem:[%s2 + $0x68] sm:$0xff]
    %v113 = vld [vmem:[%s2 + $0x70] sm:$0xff]
    %v114 = vld [vmem:[%s2 + $0x78] sm:$0xff]
    %v115 = vld [vmem:[%s2 + $0x80] sm:$0xff]
    %v116 = vld [vmem:[%s2 + $0x88] sm:$0xff]
    %v117 = vld [vmem:[%s2 + $0x90] sm:$0xff]
    %v118 = vld [vmem:[%s2 + $0x98] sm:$0xff]
    %v119 = vld [vmem:[%s2 + $0xa0] sm:$0xff]
    %v120 = vld [vmem:[%s2 + $0xa8] sm:$0xff]
    %v121 = vld [vmem:[%s2 + $0xb0] sm:$0xff]
    %v122 = vld [vmem:[%s2 + $0xb8] sm:$0xff]
    %v123 = vld [vmem:[%s2 + $0xc0] sm:$0xff]
    %v124 = vld [vmem:[%s2 + $0xc8] sm:$0xff]
    %v125 = vld [vmem:[%s2 + $0xd0] sm:$0xff]
    %v126 = vld [vmem:[%s2 + $0xd8] sm:$0xff]
    %v127 = vld [vmem:[%s2 + $0xe0] sm:$0xff]
    %v128 = vld [vmem:[%s2 + $0xe8] sm:$0xff]
    %v129 = vld [vmem:[%s2 + $0xf0] sm:$0xff]
    %v130 = vld [vmem:[%s2 + $0xf8] sm:$0xff]
    %v132 = vperm.slane %v80, 0
    %v133 = vperm.slane %v80, 1
    %v168 = vunpack.c.l.b16 %v99
    %v169 = vunpack.c.h.b16 %v99
    %v170 = vunpack.c.l.b16 %v100
    %v171 = vunpack.c.h.b16 %v100
    %v172 = vunpack.c.l.b16 %v101
    %v173 = vunpack.c.h.b16 %v101
    %v174 = vunpack.c.l.b16 %v102
    %v175 = vunpack.c.h.b16 %v102
    %v176 = vunpack.c.l.b16 %v103
    %v177 = vunpack.c.h.b16 %v103
    %v178 = vunpack.c.l.b16 %v104
    %v179 = vunpack.c.h.b16 %v104
    %v180 = vunpack.c.l.b16 %v105
    %v181 = vunpack.c.h.b16 %v105
    %v182 = vunpack.c.l.b16 %v106
    %v183 = vunpack.c.h.b16 %v106
    %v184 = vunpack.c.l.b16 %v107
    %v185 = vunpack.c.h.b16 %v107
    %v186 = vunpack.c.l.b16 %v108
    %v187 = vunpack.c.h.b16 %v108
    %v188 = vunpack.c.l.b16 %v109
    %v189 = vunpack.c.h.b16 %v109
    %v190 = vunpack.c.l.b16 %v110
    %v191 = vunpack.c.h.b16 %v110
    %v192 = vunpack.c.l.b16 %v111
    %v193 = vunpack.c.h.b16 %v111
    %v194 = vunpack.c.l.b16 %v112
    %v195 = vunpack.c.h.b16 %v112
    %v196 = vunpack.c.l.b16 %v113
    %v197 = vunpack.c.h.b16 %v113
    %v198 = vunpack.c.l.b16 %v114
    %v199 = vunpack.c.h.b16 %v114
    %v200 = vunpack.c.l.b16 %v115
    %v201 = vunpack.c.h.b16 %v115
    %v202 = vunpack.c.l.b16 %v116
    %v203 = vunpack.c.h.b16 %v116
    %v204 = vunpack.c.l.b16 %v117
    %v205 = vunpack.c.h.b16 %v117
    %v206 = vunpack.c.l.b16 %v118
    %v207 = vunpack.c.h.b16 %v118
    %v208 = vunpack.c.l.b16 %v119
    %v209 = vunpack.c.h.b16 %v119
    %v210 = vunpack.c.l.b16 %v120
    %v211 = vunpack.c.h.b16 %v120
    %v212 = vunpack.c.l.b16 %v121
    %v213 = vunpack.c.h.b16 %v121
    %v214 = vunpack.c.l.b16 %v122
    %v215 = vunpack.c.h.b16 %v122
    %v216 = vunpack.c.l.b16 %v123
    %v217 = vunpack.c.h.b16 %v123
    %v218 = vunpack.c.l.b16 %v124
    %v219 = vunpack.c.h.b16 %v124
    %v220 = vunpack.c.l.b16 %v125
    %v221 = vunpack.c.h.b16 %v125
    %v222 = vunpack.c.l.b16 %v126
    %v223 = vunpack.c.h.b16 %v126
    %v224 = vunpack.c.l.b16 %v127
    %v225 = vunpack.c.h.b16 %v127
    %v226 = vunpack.c.l.b16 %v128
    %v227 = vunpack.c.h.b16 %v128
    %v228 = vunpack.c.l.b16 %v129
    %v229 = vunpack.c.h.b16 %v129
    %v230 = vunpack.c.l.b16 %v130
    %v231 = vunpack.c.h.b16 %v130
    %v232 = vpack.c.b16 %v170, %v168
    %v233 = vpack.c.b16 %v171, %v169
    %v234 = vpack.c.b16 %v174, %v172
    %v235 = vpack.c.b16 %v175, %v173
    %v236 = vpack.c.b16 %v178, %v176
    %v237 = vpack.c.b16 %v179, %v177
    %v238 = vpack.c.b16 %v182, %v180
    %v239 = vpack.c.b16 %v183, %v181
    %v240 = vpack.c.b16 %v186, %v184
    %v241 = vpack.c.b16 %v187, %v185
    %v242 = vpack.c.b16 %v190, %v188
    %v243 = vpack.c.b16 %v191, %v189
    %v244 = vpack.c.b16 %v194, %v192
    %v245 = vpack.c.b16 %v195, %v193
    %v246 = vpack.c.b16 %v198, %v196
    %v247 = vpack.c.b16 %v199, %v197
    %v248 = vpack.c.b16 %v202, %v200
    %v249 = vpack.c.b16 %v203, %v201
    %v250 = vpack.c.b16 %v206, %v204
    %v251 = vpack.c.b16 %v207, %v205
    %v252 = vpack.c.b16 %v210, %v208
    %v253 = vpack.c.b16 %v211, %v209
    %v254 = vpack.c.b16 %v214, %v212
    %v255 = vpack.c.b16 %v215, %v213
    %v256 = vpack.c.b16 %v218, %v216
    %v257 = vpack.c.b16 %v219, %v217
    %v258 = vpack.c.b16 %v222, %v220
    %v259 = vpack.c.b16 %v223, %v221
    %v260 = vpack.c.b16 %v226, %v224
    %v261 = vpack.c.b16 %v227, %v225
    %v262 = vpack.c.b16 %v230, %v228
    %v263 = vpack.c.b16 %v231, %v229
    %296 = vmatpush.bf16.msra.mxu0 %v246
    %297 = vmatpush.bf16.msra.mxu0 %v244
    %298 = vmatpush.bf16.msra.mxu0 %v242
    %299 = vmatpush.bf16.msra.mxu0 %v240
    %300 = vmatpush.bf16.msra.mxu0 %v238
    %301 = vmatpush.bf16.msra.mxu0 %v236
    %302 = vmatpush.bf16.msra.mxu0 %v234
    %303 = vmatpush.bf16.msra.mxu0 %v232
    %304 = vmatmul.bf16.gmra.mxu0 %v91
    %v305 = vpop.f32.mrf.mxu0
    %v306 = vadd.f32 %v132, %v305
    %v307 = vpop.f32.mrf.mxu0
    %v308 = vadd.f32 %v132, %v307
    %309 = vdwg.mxu0
    %310 = vmatpush.bf16.msra.mxu0 %v262
    %311 = vmatpush.bf16.msra.mxu0 %v260
    %312 = vmatpush.bf16.msra.mxu0 %v258
    %313 = vmatpush.bf16.msra.mxu0 %v256
    %314 = vmatpush.bf16.msra.mxu0 %v254
    %315 = vmatpush.bf16.msra.mxu0 %v252
    %316 = vmatpush.bf16.msra.mxu0 %v250
    %317 = vmatpush.bf16.msra.mxu0 %v248
    %318 = vmatmul.bf16.gmra.mxu0 %v92
    %v319 = vpop.f32.mrf.mxu0
    %v320 = vadd.f32 %v306, %v319
    %v321 = vpop.f32.mrf.mxu0
    %v322 = vadd.f32 %v308, %v321
    %323 = vdwg.mxu0
    %324 = vmatpush.bf16.msra.mxu0 %v247
    %325 = vmatpush.bf16.msra.mxu0 %v245
    %326 = vmatpush.bf16.msra.mxu0 %v243
    %327 = vmatpush.bf16.msra.mxu0 %v241
    %328 = vmatpush.bf16.msra.mxu0 %v239
    %329 = vmatpush.bf16.msra.mxu0 %v237
    %330 = vmatpush.bf16.msra.mxu0 %v235
    %331 = vmatpush.bf16.msra.mxu0 %v233
    %332 = vmatmul.bf16.gmra.mxu0 %v91
    %v333 = vpop.f32.mrf.mxu0
    %v334 = vadd.f32 %v133, %v333
    %v335 = vpop.f32.mrf.mxu0
    %v336 = vadd.f32 %v133, %v335
    %337 = vdwg.mxu0
    %338 = vmatpush.bf16.msra.mxu0 %v263
    %339 = vmatpush.bf16.msra.mxu0 %v261
    %340 = vmatpush.bf16.msra.mxu0 %v259
    %341 = vmatpush.bf16.msra.mxu0 %v257
    %342 = vmatpush.bf16.msra.mxu0 %v255
    %343 = vmatpush.bf16.msra.mxu0 %v253
    %344 = vmatpush.bf16.msra.mxu0 %v251
    %345 = vmatpush.bf16.msra.mxu0 %v249
    %346 = vmatmul.bf16.gmra.mxu0 %v92
    %v347 = vpop.f32.mrf.mxu0
    %v348 = vadd.f32 %v334, %v347
    %v349 = vpop.f32.mrf.mxu0
    %v350 = vadd.f32 %v336, %v349
    %351 = vdwg.mxu0
    %v352 = vmax.f32 %v320, 0.0
    %v353 = vmax.f32 %v348, 0.0
    %v354 = vmax.f32 %v322, 0.0
    %v355 = vmax.f32 %v350, 0.0
    %v356 = vld [vmem:[%s3] sm:$0xff]
    %v357 = vld [vmem:[%s3 + $0x8] sm:$0xff]
    %v358 = vld [vmem:[%s3 + $0x10] sm:$0xff]
    %v359 = vld [vmem:[%s3 + $0x18] sm:$0xff]
    %v360 = vld [vmem:[%s3 + $0x20] sm:$0xff]
    %v361 = vld [vmem:[%s3 + $0x28] sm:$0xff]
    %v362 = vld [vmem:[%s3 + $0x30] sm:$0xff]
    %v363 = vld [vmem:[%s3 + $0x38] sm:$0xff]
    %v364 = vld [vmem:[%s3 + $0x40] sm:$0xff]
    %v365 = vld [vmem:[%s3 + $0x48] sm:$0xff]
    %v366 = vld [vmem:[%s3 + $0x50] sm:$0xff]
    %v367 = vld [vmem:[%s3 + $0x58] sm:$0xff]
    %v368 = vld [vmem:[%s3 + $0x60] sm:$0xff]
    %v369 = vld [vmem:[%s3 + $0x68] sm:$0xff]
    %v370 = vld [vmem:[%s3 + $0x70] sm:$0xff]
    %v371 = vld [vmem:[%s3 + $0x78] sm:$0xff]
    %v372 = vld [vmem:[%s3 + $0x80] sm:$0xff]
    %v373 = vld [vmem:[%s3 + $0x88] sm:$0xff]
    %v374 = vld [vmem:[%s3 + $0x90] sm:$0xff]
    %v375 = vld [vmem:[%s3 + $0x98] sm:$0xff]
    %v376 = vld [vmem:[%s3 + $0xa0] sm:$0xff]
    %v377 = vld [vmem:[%s3 + $0xa8] sm:$0xff]
    %v378 = vld [vmem:[%s3 + $0xb0] sm:$0xff]
    %v379 = vld [vmem:[%s3 + $0xb8] sm:$0xff]
    %v380 = vld [vmem:[%s3 + $0xc0] sm:$0xff]
    %v381 = vld [vmem:[%s3 + $0xc8] sm:$0xff]
    %v382 = vld [vmem:[%s3 + $0xd0] sm:$0xff]
    %v383 = vld [vmem:[%s3 + $0xd8] sm:$0xff]
    %v384 = vld [vmem:[%s3 + $0xe0] sm:$0xff]
    %v385 = vld [vmem:[%s3 + $0xe8] sm:$0xff]
    %v386 = vld [vmem:[%s3 + $0xf0] sm:$0xff]
    %v387 = vld [vmem:[%s3 + $0xf8] sm:$0xff]
    %v389 = vperm.slane %v82, 0
    %v390 = vperm.slane %v82, 1
    %v425 = vunpack.c.l.b16 %v356
    %v426 = vunpack.c.h.b16 %v356
    %v427 = vunpack.c.l.b16 %v357
    %v428 = vunpack.c.h.b16 %v357
    %v429 = vunpack.c.l.b16 %v358
    %v430 = vunpack.c.h.b16 %v358
    %v431 = vunpack.c.l.b16 %v359
    %v432 = vunpack.c.h.b16 %v359
    %v433 = vunpack.c.l.b16 %v360
    %v434 = vunpack.c.h.b16 %v360
    %v435 = vunpack.c.l.b16 %v361
    %v436 = vunpack.c.h.b16 %v361
    %v437 = vunpack.c.l.b16 %v362
    %v438 = vunpack.c.h.b16 %v362
    %v439 = vunpack.c.l.b16 %v363
    %v440 = vunpack.c.h.b16 %v363
    %v441 = vunpack.c.l.b16 %v364
    %v442 = vunpack.c.h.b16 %v364
    %v443 = vunpack.c.l.b16 %v365
    %v444 = vunpack.c.h.b16 %v365
    %v445 = vunpack.c.l.b16 %v366
    %v446 = vunpack.c.h.b16 %v366
    %v447 = vunpack.c.l.b16 %v367
    %v448 = vunpack.c.h.b16 %v367
    %v449 = vunpack.c.l.b16 %v368
    %v450 = vunpack.c.h.b16 %v368
    %v451 = vunpack.c.l.b16 %v369
    %v452 = vunpack.c.h.b16 %v369
    %v453 = vunpack.c.l.b16 %v370
    %v454 = vunpack.c.h.b16 %v370
    %v455 = vunpack.c.l.b16 %v371
    %v456 = vunpack.c.h.b16 %v371
    %v457 = vunpack.c.l.b16 %v372
    %v458 = vunpack.c.h.b16 %v372
    %v459 = vunpack.c.l.b16 %v373
    %v460 = vunpack.c.h.b16 %v373
    %v461 = vunpack.c.l.b16 %v374
    %v462 = vunpack.c.h.b16 %v374
    %v463 = vunpack.c.l.b16 %v375
    %v464 = vunpack.c.h.b16 %v375
    %v465 = vunpack.c.l.b16 %v376
    %v466 = vunpack.c.h.b16 %v376
    %v467 = vunpack.c.l.b16 %v377
    %v468 = vunpack.c.h.b16 %v377
    %v469 = vunpack.c.l.b16 %v378
    %v470 = vunpack.c.h.b16 %v378
    %v471 = vunpack.c.l.b16 %v379
    %v472 = vunpack.c.h.b16 %v379
    %v473 = vunpack.c.l.b16 %v380
    %v474 = vunpack.c.h.b16 %v380
    %v475 = vunpack.c.l.b16 %v381
    %v476 = vunpack.c.h.b16 %v381
    %v477 = vunpack.c.l.b16 %v382
    %v478 = vunpack.c.h.b16 %v382
    %v479 = vunpack.c.l.b16 %v383
    %v480 = vunpack.c.h.b16 %v383
    %v481 = vunpack.c.l.b16 %v384
    %v482 = vunpack.c.h.b16 %v384
    %v483 = vunpack.c.l.b16 %v385
    %v484 = vunpack.c.h.b16 %v385
    %v485 = vunpack.c.l.b16 %v386
    %v486 = vunpack.c.h.b16 %v386
    %v487 = vunpack.c.l.b16 %v387
    %v488 = vunpack.c.h.b16 %v387
    %v489 = vpack.c.b16 %v427, %v425
    %v490 = vpack.c.b16 %v428, %v426
    %v491 = vpack.c.b16 %v431, %v429
    %v492 = vpack.c.b16 %v432, %v430
    %v493 = vpack.c.b16 %v435, %v433
    %v494 = vpack.c.b16 %v436, %v434
    %v495 = vpack.c.b16 %v439, %v437
    %v496 = vpack.c.b16 %v440, %v438
    %v497 = vpack.c.b16 %v443, %v441
    %v498 = vpack.c.b16 %v444, %v442
    %v499 = vpack.c.b16 %v447, %v445
    %v500 = vpack.c.b16 %v448, %v446
    %v501 = vpack.c.b16 %v451, %v449
    %v502 = vpack.c.b16 %v452, %v450
    %v503 = vpack.c.b16 %v455, %v453
    %v504 = vpack.c.b16 %v456, %v454
    %v505 = vpack.c.b16 %v459, %v457
    %v506 = vpack.c.b16 %v460, %v458
    %v507 = vpack.c.b16 %v463, %v461
    %v508 = vpack.c.b16 %v464, %v462
    %v509 = vpack.c.b16 %v467, %v465
    %v510 = vpack.c.b16 %v468, %v466
    %v511 = vpack.c.b16 %v471, %v469
    %v512 = vpack.c.b16 %v472, %v470
    %v513 = vpack.c.b16 %v475, %v473
    %v514 = vpack.c.b16 %v476, %v474
    %v515 = vpack.c.b16 %v479, %v477
    %v516 = vpack.c.b16 %v480, %v478
    %v517 = vpack.c.b16 %v483, %v481
    %v518 = vpack.c.b16 %v484, %v482
    %v519 = vpack.c.b16 %v487, %v485
    %v520 = vpack.c.b16 %v488, %v486
    %553 = vmatpush.bf16.msra.mxu0 %v503
    %554 = vmatpush.bf16.msra.mxu0 %v501
    %555 = vmatpush.bf16.msra.mxu0 %v499
    %556 = vmatpush.bf16.msra.mxu0 %v497
    %557 = vmatpush.bf16.msra.mxu0 %v495
    %558 = vmatpush.bf16.msra.mxu0 %v493
    %559 = vmatpush.bf16.msra.mxu0 %v491
    %560 = vmatpush.bf16.msra.mxu0 %v489
    %561 = vmatmul.bf16.gmra.mxu0 %v97
    %v562 = vpop.f32.mrf.mxu0
    %v563 = vadd.f32 %v389, %v562
    %v564 = vpop.f32.mrf.mxu0
    %v565 = vadd.f32 %v389, %v564
    %566 = vdwg.mxu0
    %567 = vmatpush.bf16.msra.mxu0 %v519
    %568 = vmatpush.bf16.msra.mxu0 %v517
    %569 = vmatpush.bf16.msra.mxu0 %v515
    %570 = vmatpush.bf16.msra.mxu0 %v513
    %571 = vmatpush.bf16.msra.mxu0 %v511
    %572 = vmatpush.bf16.msra.mxu0 %v509
    %573 = vmatpush.bf16.msra.mxu0 %v507
    %574 = vmatpush.bf16.msra.mxu0 %v505
    %575 = vmatmul.bf16.gmra.mxu0 %v98
    %v576 = vpop.f32.mrf.mxu0
    %v577 = vadd.f32 %v563, %v576
    %v578 = vpop.f32.mrf.mxu0
    %v579 = vadd.f32 %v565, %v578
    %580 = vdwg.mxu0
    %581 = vmatpush.bf16.msra.mxu0 %v504
    %582 = vmatpush.bf16.msra.mxu0 %v502
    %583 = vmatpush.bf16.msra.mxu0 %v500
    %584 = vmatpush.bf16.msra.mxu0 %v498
    %585 = vmatpush.bf16.msra.mxu0 %v496
    %586 = vmatpush.bf16.msra.mxu0 %v494
    %587 = vmatpush.bf16.msra.mxu0 %v492
    %588 = vmatpush.bf16.msra.mxu0 %v490
    %589 = vmatmul.bf16.gmra.mxu0 %v97
    %v590 = vpop.f32.mrf.mxu0
    %v591 = vadd.f32 %v390, %v590
    %v592 = vpop.f32.mrf.mxu0
    %v593 = vadd.f32 %v390, %v592
    %594 = vdwg.mxu0
    %595 = vmatpush.bf16.msra.mxu0 %v520
    %596 = vmatpush.bf16.msra.mxu0 %v518
    %597 = vmatpush.bf16.msra.mxu0 %v516
    %598 = vmatpush.bf16.msra.mxu0 %v514
    %599 = vmatpush.bf16.msra.mxu0 %v512
    %600 = vmatpush.bf16.msra.mxu0 %v510
    %601 = vmatpush.bf16.msra.mxu0 %v508
    %602 = vmatpush.bf16.msra.mxu0 %v506
    %603 = vmatmul.bf16.gmra.mxu0 %v98
    %v604 = vpop.f32.mrf.mxu0
    %v605 = vadd.f32 %v591, %v604
    %v606 = vpop.f32.mrf.mxu0
    %v607 = vadd.f32 %v593, %v606
    %608 = vdwg.mxu0
    %v609 = vmax.f32 %v577, 0.0
    %v610 = vmax.f32 %v605, 0.0
    %v611 = vmax.f32 %v579, 0.0
    %v612 = vmax.f32 %v607, 0.0
    %v613 = vpack.c.bf16 %v354, %v352
    %v614 = vpack.c.bf16 %v355, %v353
    %v615 = vld [vmem:[#allocation2] sm:$0xff]
    %v616 = vld [vmem:[#allocation2 + $0x8] sm:$0xff]
    %v617 = vld [vmem:[#allocation2 + $0x10] sm:$0xff]
    %v618 = vld [vmem:[#allocation2 + $0x18] sm:$0xff]
    %v619 = vld [vmem:[#allocation2 + $0x20] sm:$0xff]
    %v620 = vld [vmem:[#allocation2 + $0x28] sm:$0xff]
    %v621 = vld [vmem:[#allocation2 + $0x30] sm:$0xff]
    %v622 = vld [vmem:[#allocation2 + $0x38] sm:$0xff]
    %v623 = vld [vmem:[#allocation2 + $0x40] sm:$0xff]
    %v624 = vld [vmem:[#allocation2 + $0x48] sm:$0xff]
    %v625 = vld [vmem:[#allocation2 + $0x50] sm:$0xff]
    %v626 = vld [vmem:[#allocation2 + $0x58] sm:$0xff]
    %v627 = vld [vmem:[#allocation2 + $0x60] sm:$0xff]
    %v628 = vld [vmem:[#allocation2 + $0x68] sm:$0xff]
    %v629 = vld [vmem:[#allocation2 + $0x70] sm:$0xff]
    %v630 = vld [vmem:[#allocation2 + $0x78] sm:$0xff]
    %v631 = vld [vmem:[#allocation2 + $0x80] sm:$0xff]
    %v632 = vld [vmem:[#allocation2 + $0x88] sm:$0xff]
    %v633 = vld [vmem:[#allocation2 + $0x90] sm:$0xff]
    %v634 = vld [vmem:[#allocation2 + $0x98] sm:$0xff]
    %v635 = vld [vmem:[#allocation2 + $0xa0] sm:$0xff]
    %v636 = vld [vmem:[#allocation2 + $0xa8] sm:$0xff]
    %v637 = vld [vmem:[#allocation2 + $0xb0] sm:$0xff]
    %v638 = vld [vmem:[#allocation2 + $0xb8] sm:$0xff]
    %v639 = vld [vmem:[#allocation2 + $0xc0] sm:$0xff]
    %v640 = vld [vmem:[#allocation2 + $0xc8] sm:$0xff]
    %v641 = vld [vmem:[#allocation2 + $0xd0] sm:$0xff]
    %v642 = vld [vmem:[#allocation2 + $0xd8] sm:$0xff]
    %v643 = vld [vmem:[#allocation2 + $0xe0] sm:$0xff]
    %v644 = vld [vmem:[#allocation2 + $0xe8] sm:$0xff]
    %v645 = vld [vmem:[#allocation2 + $0xf0] sm:$0xff]
    %v646 = vld [vmem:[#allocation2 + $0xf8] sm:$0xff]
    %v647 = vpack.c.bf16 %v611, %v609
    %v648 = vpack.c.bf16 %v612, %v610
    %v649 = vld [vmem:[#allocation4] sm:$0xff]
    %v650 = vld [vmem:[#allocation4 + $0x8] sm:$0xff]
    %v651 = vld [vmem:[#allocation4 + $0x10] sm:$0xff]
    %v652 = vld [vmem:[#allocation4 + $0x18] sm:$0xff]
    %v653 = vld [vmem:[#allocation4 + $0x20] sm:$0xff]
    %v654 = vld [vmem:[#allocation4 + $0x28] sm:$0xff]
    %v655 = vld [vmem:[#allocation4 + $0x30] sm:$0xff]
    %v656 = vld [vmem:[#allocation4 + $0x38] sm:$0xff]
    %v657 = vld [vmem:[#allocation4 + $0x40] sm:$0xff]
    %v658 = vld [vmem:[#allocation4 + $0x48] sm:$0xff]
    %v659 = vld [vmem:[#allocation4 + $0x50] sm:$0xff]
    %v660 = vld [vmem:[#allocation4 + $0x58] sm:$0xff]
    %v661 = vld [vmem:[#allocation4 + $0x60] sm:$0xff]
    %v662 = vld [vmem:[#allocation4 + $0x68] sm:$0xff]
    %v663 = vld [vmem:[#allocation4 + $0x70] sm:$0xff]
    %v664 = vld [vmem:[#allocation4 + $0x78] sm:$0xff]
    %v665 = vld [vmem:[#allocation4 + $0x80] sm:$0xff]
    %v666 = vld [vmem:[#allocation4 + $0x88] sm:$0xff]
    %v667 = vld [vmem:[#allocation4 + $0x90] sm:$0xff]
    %v668 = vld [vmem:[#allocation4 + $0x98] sm:$0xff]
    %v669 = vld [vmem:[#allocation4 + $0xa0] sm:$0xff]
    %v670 = vld [vmem:[#allocation4 + $0xa8] sm:$0xff]
    %v671 = vld [vmem:[#allocation4 + $0xb0] sm:$0xff]
    %v672 = vld [vmem:[#allocation4 + $0xb8] sm:$0xff]
    %v673 = vld [vmem:[#allocation4 + $0xc0] sm:$0xff]
    %v674 = vld [vmem:[#allocation4 + $0xc8] sm:$0xff]
    %v675 = vld [vmem:[#allocation4 + $0xd0] sm:$0xff]
    %v676 = vld [vmem:[#allocation4 + $0xd8] sm:$0xff]
    %v677 = vld [vmem:[#allocation4 + $0xe0] sm:$0xff]
    %v678 = vld [vmem:[#allocation4 + $0xe8] sm:$0xff]
    %v679 = vld [vmem:[#allocation4 + $0xf0] sm:$0xff]
    %v680 = vld [vmem:[#allocation4 + $0xf8] sm:$0xff]
    %v713 = vunpack.c.l.b16 %v649
    %v714 = vunpack.c.h.b16 %v649
    %v715 = vunpack.c.l.b16 %v650
    %v716 = vunpack.c.h.b16 %v650
    %v717 = vunpack.c.l.b16 %v651
    %v718 = vunpack.c.h.b16 %v651
    %v719 = vunpack.c.l.b16 %v652
    %v720 = vunpack.c.h.b16 %v652
    %v721 = vunpack.c.l.b16 %v653
    %v722 = vunpack.c.h.b16 %v653
    %v723 = vunpack.c.l.b16 %v654
    %v724 = vunpack.c.h.b16 %v654
    %v725 = vunpack.c.l.b16 %v655
    %v726 = vunpack.c.h.b16 %v655
    %v727 = vunpack.c.l.b16 %v656
    %v728 = vunpack.c.h.b16 %v656
    %v729 = vunpack.c.l.b16 %v657
    %v730 = vunpack.c.h.b16 %v657
    %v731 = vunpack.c.l.b16 %v658
    %v732 = vunpack.c.h.b16 %v658
    %v733 = vunpack.c.l.b16 %v659
    %v734 = vunpack.c.h.b16 %v659
    %v735 = vunpack.c.l.b16 %v660
    %v736 = vunpack.c.h.b16 %v660
    %v737 = vunpack.c.l.b16 %v661
    %v738 = vunpack.c.h.b16 %v661
    %v739 = vunpack.c.l.b16 %v662
    %v740 = vunpack.c.h.b16 %v662
    %v741 = vunpack.c.l.b16 %v663
    %v742 = vunpack.c.h.b16 %v663
    %v743 = vunpack.c.l.b16 %v664
    %v744 = vunpack.c.h.b16 %v664
    %v745 = vunpack.c.l.b16 %v665
    %v746 = vunpack.c.h.b16 %v665
    %v747 = vunpack.c.l.b16 %v666
    %v748 = vunpack.c.h.b16 %v666
    %v749 = vunpack.c.l.b16 %v667
    %v750 = vunpack.c.h.b16 %v667
    %v751 = vunpack.c.l.b16 %v668
    %v752 = vunpack.c.h.b16 %v668
    %v753 = vunpack.c.l.b16 %v669
    %v754 = vunpack.c.h.b16 %v669
    %v755 = vunpack.c.l.b16 %v670
    %v756 = vunpack.c.h.b16 %v670
    %v757 = vunpack.c.l.b16 %v671
    %v758 = vunpack.c.h.b16 %v671
    %v759 = vunpack.c.l.b16 %v672
    %v760 = vunpack.c.h.b16 %v672
    %v761 = vunpack.c.l.b16 %v673
    %v762 = vunpack.c.h.b16 %v673
    %v763 = vunpack.c.l.b16 %v674
    %v764 = vunpack.c.h.b16 %v674
    %v765 = vunpack.c.l.b16 %v675
    %v766 = vunpack.c.h.b16 %v675
    %v767 = vunpack.c.l.b16 %v676
    %v768 = vunpack.c.h.b16 %v676
    %v769 = vunpack.c.l.b16 %v677
    %v770 = vunpack.c.h.b16 %v677
    %v771 = vunpack.c.l.b16 %v678
    %v772 = vunpack.c.h.b16 %v678
    %v773 = vunpack.c.l.b16 %v679
    %v774 = vunpack.c.h.b16 %v679
    %v775 = vunpack.c.l.b16 %v680
    %v776 = vunpack.c.h.b16 %v680
    %v777 = vpack.c.b16 %v715, %v713
    %v778 = vpack.c.b16 %v716, %v714
    %v779 = vpack.c.b16 %v719, %v717
    %v780 = vpack.c.b16 %v720, %v718
    %v781 = vpack.c.b16 %v723, %v721
    %v782 = vpack.c.b16 %v724, %v722
    %v783 = vpack.c.b16 %v727, %v725
    %v784 = vpack.c.b16 %v728, %v726
    %v785 = vpack.c.b16 %v731, %v729
    %v786 = vpack.c.b16 %v732, %v730
    %v787 = vpack.c.b16 %v735, %v733
    %v788 = vpack.c.b16 %v736, %v734
    %v789 = vpack.c.b16 %v739, %v737
    %v790 = vpack.c.b16 %v740, %v738
    %v791 = vpack.c.b16 %v743, %v741
    %v792 = vpack.c.b16 %v744, %v742
    %v793 = vpack.c.b16 %v747, %v745
    %v794 = vpack.c.b16 %v748, %v746
    %v795 = vpack.c.b16 %v751, %v749
    %v796 = vpack.c.b16 %v752, %v750
    %v797 = vpack.c.b16 %v755, %v753
    %v798 = vpack.c.b16 %v756, %v754
    %v799 = vpack.c.b16 %v759, %v757
    %v800 = vpack.c.b16 %v760, %v758
    %v801 = vpack.c.b16 %v763, %v761
    %v802 = vpack.c.b16 %v764, %v762
    %v803 = vpack.c.b16 %v767, %v765
    %v804 = vpack.c.b16 %v768, %v766
    %v805 = vpack.c.b16 %v771, %v769
    %v806 = vpack.c.b16 %v772, %v770
    %v807 = vpack.c.b16 %v775, %v773
    %v808 = vpack.c.b16 %v776, %v774
    %841 = vmatpush.bf16.msra.mxu0 %v791
    %842 = vmatpush.bf16.msra.mxu0 %v789
    %843 = vmatpush.bf16.msra.mxu0 %v787
    %844 = vmatpush.bf16.msra.mxu0 %v785
    %845 = vmatpush.bf16.msra.mxu0 %v783
    %846 = vmatpush.bf16.msra.mxu0 %v781
    %847 = vmatpush.bf16.msra.mxu0 %v779
    %848 = vmatpush.bf16.msra.mxu0 %v777
    %849 = vmatmul.bf16.gmra.mxu0 %v647
    %v850 = vpop.f32.mrf.mxu0
    %v851 = vadd.f32 0.0, %v850
    %v852 = vpop.f32.mrf.mxu0
    %v853 = vadd.f32 0.0, %v852
    %854 = vdwg.mxu0
    %855 = vmatpush.bf16.msra.mxu0 %v807
    %856 = vmatpush.bf16.msra.mxu0 %v805
    %857 = vmatpush.bf16.msra.mxu0 %v803
    %858 = vmatpush.bf16.msra.mxu0 %v801
    %859 = vmatpush.bf16.msra.mxu0 %v799
    %860 = vmatpush.bf16.msra.mxu0 %v797
    %861 = vmatpush.bf16.msra.mxu0 %v795
    %862 = vmatpush.bf16.msra.mxu0 %v793
    %863 = vmatmul.bf16.gmra.mxu0 %v648
    %v864 = vpop.f32.mrf.mxu0
    %v865 = vadd.f32 %v851, %v864
    %v866 = vpop.f32.mrf.mxu0
    %v867 = vadd.f32 %v853, %v866
    %868 = vdwg.mxu0
    %869 = vmatpush.bf16.msra.mxu0 %v792
    %870 = vmatpush.bf16.msra.mxu0 %v790
    %871 = vmatpush.bf16.msra.mxu0 %v788
    %872 = vmatpush.bf16.msra.mxu0 %v786
    %873 = vmatpush.bf16.msra.mxu0 %v784
    %874 = vmatpush.bf16.msra.mxu0 %v782
    %875 = vmatpush.bf16.msra.mxu0 %v780
    %876 = vmatpush.bf16.msra.mxu0 %v778
    %877 = vmatmul.bf16.gmra.mxu0 %v647
    %v878 = vpop.f32.mrf.mxu0
    %v879 = vadd.f32 0.0, %v878
    %v880 = vpop.f32.mrf.mxu0
    %v881 = vadd.f32 0.0, %v880
    %882 = vdwg.mxu0
    %883 = vmatpush.bf16.msra.mxu0 %v808
    %884 = vmatpush.bf16.msra.mxu0 %v806
    %885 = vmatpush.bf16.msra.mxu0 %v804
    %886 = vmatpush.bf16.msra.mxu0 %v802
    %887 = vmatpush.bf16.msra.mxu0 %v800
    %888 = vmatpush.bf16.msra.mxu0 %v798
    %889 = vmatpush.bf16.msra.mxu0 %v796
    %890 = vmatpush.bf16.msra.mxu0 %v794
    %891 = vmatmul.bf16.gmra.mxu0 %v648
    %v892 = vpop.f32.mrf.mxu0
    %v893 = vadd.f32 %v879, %v892
    %v894 = vpop.f32.mrf.mxu0
    %v895 = vadd.f32 %v881, %v894
    %896 = vdwg.mxu0
    %v929 = vunpack.c.l.b16 %v615
    %v930 = vunpack.c.h.b16 %v615
    %v931 = vunpack.c.l.b16 %v616
    %v932 = vunpack.c.h.b16 %v616
    %v933 = vunpack.c.l.b16 %v617
    %v934 = vunpack.c.h.b16 %v617
    %v935 = vunpack.c.l.b16 %v618
    %v936 = vunpack.c.h.b16 %v618
    %v937 = vunpack.c.l.b16 %v619
    %v938 = vunpack.c.h.b16 %v619
    %v939 = vunpack.c.l.b16 %v620
    %v940 = vunpack.c.h.b16 %v620
    %v941 = vunpack.c.l.b16 %v621
    %v942 = vunpack.c.h.b16 %v621
    %v943 = vunpack.c.l.b16 %v622
    %v944 = vunpack.c.h.b16 %v622
    %v945 = vunpack.c.l.b16 %v623
    %v946 = vunpack.c.h.b16 %v623
    %v947 = vunpack.c.l.b16 %v624
    %v948 = vunpack.c.h.b16 %v624
    %v949 = vunpack.c.l.b16 %v625
    %v950 = vunpack.c.h.b16 %v625
    %v951 = vunpack.c.l.b16 %v626
    %v952 = vunpack.c.h.b16 %v626
    %v953 = vunpack.c.l.b16 %v627
    %v954 = vunpack.c.h.b16 %v627
    %v955 = vunpack.c.l.b16 %v628
    %v956 = vunpack.c.h.b16 %v628
    %v957 = vunpack.c.l.b16 %v629
    %v958 = vunpack.c.h.b16 %v629
    %v959 = vunpack.c.l.b16 %v630
    %v960 = vunpack.c.h.b16 %v630
    %v961 = vunpack.c.l.b16 %v631
    %v962 = vunpack.c.h.b16 %v631
    %v963 = vunpack.c.l.b16 %v632
    %v964 = vunpack.c.h.b16 %v632
    %v965 = vunpack.c.l.b16 %v633
    %v966 = vunpack.c.h.b16 %v633
    %v967 = vunpack.c.l.b16 %v634
    %v968 = vunpack.c.h.b16 %v634
    %v969 = vunpack.c.l.b16 %v635
    %v970 = vunpack.c.h.b16 %v635
    %v971 = vunpack.c.l.b16 %v636
    %v972 = vunpack.c.h.b16 %v636
    %v973 = vunpack.c.l.b16 %v637
    %v974 = vunpack.c.h.b16 %v637
    %v975 = vunpack.c.l.b16 %v638
    %v976 = vunpack.c.h.b16 %v638
    %v977 = vunpack.c.l.b16 %v639
    %v978 = vunpack.c.h.b16 %v639
    %v979 = vunpack.c.l.b16 %v640
    %v980 = vunpack.c.h.b16 %v640
    %v981 = vunpack.c.l.b16 %v641
    %v982 = vunpack.c.h.b16 %v641
    %v983 = vunpack.c.l.b16 %v642
    %v984 = vunpack.c.h.b16 %v642
    %v985 = vunpack.c.l.b16 %v643
    %v986 = vunpack.c.h.b16 %v643
    %v987 = vunpack.c.l.b16 %v644
    %v988 = vunpack.c.h.b16 %v644
    %v989 = vunpack.c.l.b16 %v645
    %v990 = vunpack.c.h.b16 %v645
    %v991 = vunpack.c.l.b16 %v646
    %v992 = vunpack.c.h.b16 %v646
    %v993 = vpack.c.b16 %v931, %v929
    %v994 = vpack.c.b16 %v932, %v930
    %v995 = vpack.c.b16 %v935, %v933
    %v996 = vpack.c.b16 %v936, %v934
    %v997 = vpack.c.b16 %v939, %v937
    %v998 = vpack.c.b16 %v940, %v938
    %v999 = vpack.c.b16 %v943, %v941
    %v1000 = vpack.c.b16 %v944, %v942
    %v1001 = vpack.c.b16 %v947, %v945
    %v1002 = vpack.c.b16 %v948, %v946
    %v1003 = vpack.c.b16 %v951, %v949
    %v1004 = vpack.c.b16 %v952, %v950
    %v1005 = vpack.c.b16 %v955, %v953
    %v1006 = vpack.c.b16 %v956, %v954
    %v1007 = vpack.c.b16 %v959, %v957
    %v1008 = vpack.c.b16 %v960, %v958
    %v1009 = vpack.c.b16 %v963, %v961
    %v1010 = vpack.c.b16 %v964, %v962
    %v1011 = vpack.c.b16 %v967, %v965
    %v1012 = vpack.c.b16 %v968, %v966
    %v1013 = vpack.c.b16 %v971, %v969
    %v1014 = vpack.c.b16 %v972, %v970
    %v1015 = vpack.c.b16 %v975, %v973
    %v1016 = vpack.c.b16 %v976, %v974
    %v1017 = vpack.c.b16 %v979, %v977
    %v1018 = vpack.c.b16 %v980, %v978
    %v1019 = vpack.c.b16 %v983, %v981
    %v1020 = vpack.c.b16 %v984, %v982
    %v1021 = vpack.c.b16 %v987, %v985
    %v1022 = vpack.c.b16 %v988, %v986
    %v1023 = vpack.c.b16 %v991, %v989
    %v1024 = vpack.c.b16 %v992, %v990
    %1057 = vmatpush.bf16.msra.mxu0 %v1007
    %1058 = vmatpush.bf16.msra.mxu0 %v1005
    %1059 = vmatpush.bf16.msra.mxu0 %v1003
    %1060 = vmatpush.bf16.msra.mxu0 %v1001
    %1061 = vmatpush.bf16.msra.mxu0 %v999
    %1062 = vmatpush.bf16.msra.mxu0 %v997
    %1063 = vmatpush.bf16.msra.mxu0 %v995
    %1064 = vmatpush.bf16.msra.mxu0 %v993
    %1065 = vmatmul.bf16.gmra.mxu0 %v613
    %v1066 = vpop.f32.mrf.mxu0
    %v1067 = vadd.f32 %v865, %v1066
    %v1068 = vpop.f32.mrf.mxu0
    %v1069 = vadd.f32 %v867, %v1068
    %1070 = vdwg.mxu0
    %1071 = vmatpush.bf16.msra.mxu0 %v1023
    %1072 = vmatpush.bf16.msra.mxu0 %v1021
    %1073 = vmatpush.bf16.msra.mxu0 %v1019
    %1074 = vmatpush.bf16.msra.mxu0 %v1017
    %1075 = vmatpush.bf16.msra.mxu0 %v1015
    %1076 = vmatpush.bf16.msra.mxu0 %v1013
    %1077 = vmatpush.bf16.msra.mxu0 %v1011
    %1078 = vmatpush.bf16.msra.mxu0 %v1009
    %1079 = vmatmul.bf16.gmra.mxu0 %v614
    %v1080 = vpop.f32.mrf.mxu0
    %v1081 = vadd.f32 %v1067, %v1080
    %v1082 = vpop.f32.mrf.mxu0
    %v1083 = vadd.f32 %v1069, %v1082
    %1084 = vdwg.mxu0
    %1085 = vmatpush.bf16.msra.mxu0 %v1008
    %1086 = vmatpush.bf16.msra.mxu0 %v1006
    %1087 = vmatpush.bf16.msra.mxu0 %v1004
    %1088 = vmatpush.bf16.msra.mxu0 %v1002
    %1089 = vmatpush.bf16.msra.mxu0 %v1000
    %1090 = vmatpush.bf16.msra.mxu0 %v998
    %1091 = vmatpush.bf16.msra.mxu0 %v996
    %1092 = vmatpush.bf16.msra.mxu0 %v994
    %1093 = vmatmul.bf16.gmra.mxu0 %v613
    %v1094 = vpop.f32.mrf.mxu0
    %v1095 = vadd.f32 %v893, %v1094
    %v1096 = vpop.f32.mrf.mxu0
    %v1097 = vadd.f32 %v895, %v1096
    %1098 = vdwg.mxu0
    %1099 = vmatpush.bf16.msra.mxu0 %v1024
    %1100 = vmatpush.bf16.msra.mxu0 %v1022
    %1101 = vmatpush.bf16.msra.mxu0 %v1020
    %1102 = vmatpush.bf16.msra.mxu0 %v1018
    %1103 = vmatpush.bf16.msra.mxu0 %v1016
    %1104 = vmatpush.bf16.msra.mxu0 %v1014
    %1105 = vmatpush.bf16.msra.mxu0 %v1012
    %1106 = vmatpush.bf16.msra.mxu0 %v1010
    %1107 = vmatmul.bf16.gmra.mxu0 %v614
    %v1108 = vpop.f32.mrf.mxu0
    %v1109 = vadd.f32 %v1095, %v1108
    %v1110 = vpop.f32.mrf.mxu0
    %v1111 = vadd.f32 %v1097, %v1110
    %1112 = vdwg.mxu0
    %v1114 = vperm.slane %v84, 0
    %v1115 = vperm.slane %v84, 1
    %v1118 = vadd.f32 %v1081, %v1114
    %v1119 = vadd.f32 %v1109, %v1115
    %v1120 = vadd.f32 %v1083, %v1114
    %v1121 = vadd.f32 %v1111, %v1115
    %v1122 = vmax.f32 %v1118, 0.0
    %v1123 = vmax.f32 %v1119, 0.0
    %v1124 = vmax.f32 %v1120, 0.0
    %v1125 = vmax.f32 %v1121, 0.0
    %v1126 = vpack.c.bf16 %v1124, %v1122
    %v1127 = vpack.c.bf16 %v1125, %v1123
    %v1128 = vld [vmem:[#allocation6] sm:$0xf]
    %v1129 = vld [vmem:[#allocation6 + $0x4] sm:$0xf]
    %v1130 = vld [vmem:[#allocation6 + $0x8] sm:$0xf]
    %v1131 = vld [vmem:[#allocation6 + $0xc] sm:$0xf]
    %v1132 = vld [vmem:[#allocation6 + $0x10] sm:$0xf]
    %v1133 = vld [vmem:[#allocation6 + $0x14] sm:$0xf]
    %v1134 = vld [vmem:[#allocation6 + $0x18] sm:$0xf]
    %v1135 = vld [vmem:[#allocation6 + $0x1c] sm:$0xf]
    %v1136 = vld [vmem:[#allocation6 + $0x20] sm:$0xf]
    %v1137 = vld [vmem:[#allocation6 + $0x24] sm:$0xf]
    %v1138 = vld [vmem:[#allocation6 + $0x28] sm:$0xf]
    %v1139 = vld [vmem:[#allocation6 + $0x2c] sm:$0xf]
    %v1140 = vld [vmem:[#allocation6 + $0x30] sm:$0xf]
    %v1141 = vld [vmem:[#allocation6 + $0x34] sm:$0xf]
    %v1142 = vld [vmem:[#allocation6 + $0x38] sm:$0xf]
    %v1143 = vld [vmem:[#allocation6 + $0x3c] sm:$0xf]
    %v1144 = vld [vmem:[#allocation6 + $0x40] sm:$0xf]
    %v1145 = vld [vmem:[#allocation6 + $0x44] sm:$0xf]
    %v1146 = vld [vmem:[#allocation6 + $0x48] sm:$0xf]
    %v1147 = vld [vmem:[#allocation6 + $0x4c] sm:$0xf]
    %v1148 = vld [vmem:[#allocation6 + $0x50] sm:$0xf]
    %v1149 = vld [vmem:[#allocation6 + $0x54] sm:$0xf]
    %v1150 = vld [vmem:[#allocation6 + $0x58] sm:$0xf]
    %v1151 = vld [vmem:[#allocation6 + $0x5c] sm:$0xf]
    %v1152 = vld [vmem:[#allocation6 + $0x60] sm:$0xf]
    %v1153 = vld [vmem:[#allocation6 + $0x64] sm:$0xf]
    %v1154 = vld [vmem:[#allocation6 + $0x68] sm:$0xf]
    %v1155 = vld [vmem:[#allocation6 + $0x6c] sm:$0xf]
    %v1156 = vld [vmem:[#allocation6 + $0x70] sm:$0xf]
    %v1157 = vld [vmem:[#allocation6 + $0x74] sm:$0xf]
    %v1158 = vld [vmem:[#allocation6 + $0x78] sm:$0xf]
    %v1159 = vld [vmem:[#allocation6 + $0x7c] sm:$0xf]
    %v1192 = vunpack.c.l.b16 %v1128
    %v1193 = vunpack.c.l.b16 %v1129
    %v1194 = vunpack.c.l.b16 %v1130
    %v1195 = vunpack.c.l.b16 %v1131
    %v1196 = vunpack.c.l.b16 %v1132
    %v1197 = vunpack.c.l.b16 %v1133
    %v1198 = vunpack.c.l.b16 %v1134
    %v1199 = vunpack.c.l.b16 %v1135
    %v1200 = vunpack.c.l.b16 %v1136
    %v1201 = vunpack.c.l.b16 %v1137
    %v1202 = vunpack.c.l.b16 %v1138
    %v1203 = vunpack.c.l.b16 %v1139
    %v1204 = vunpack.c.l.b16 %v1140
    %v1205 = vunpack.c.l.b16 %v1141
    %v1206 = vunpack.c.l.b16 %v1142
    %v1207 = vunpack.c.l.b16 %v1143
    %v1208 = vunpack.c.l.b16 %v1144
    %v1209 = vunpack.c.l.b16 %v1145
    %v1210 = vunpack.c.l.b16 %v1146
    %v1211 = vunpack.c.l.b16 %v1147
    %v1212 = vunpack.c.l.b16 %v1148
    %v1213 = vunpack.c.l.b16 %v1149
    %v1214 = vunpack.c.l.b16 %v1150
    %v1215 = vunpack.c.l.b16 %v1151
    %v1216 = vunpack.c.l.b16 %v1152
    %v1217 = vunpack.c.l.b16 %v1153
    %v1218 = vunpack.c.l.b16 %v1154
    %v1219 = vunpack.c.l.b16 %v1155
    %v1220 = vunpack.c.l.b16 %v1156
    %v1221 = vunpack.c.l.b16 %v1157
    %v1222 = vunpack.c.l.b16 %v1158
    %v1223 = vunpack.c.l.b16 %v1159
    %v1224 = vpack.c.b16 %v1193, %v1192
    %v1225 = vpack.c.b16 %v1195, %v1194
    %v1226 = vpack.c.b16 %v1197, %v1196
    %v1227 = vpack.c.b16 %v1199, %v1198
    %v1228 = vpack.c.b16 %v1201, %v1200
    %v1229 = vpack.c.b16 %v1203, %v1202
    %v1230 = vpack.c.b16 %v1205, %v1204
    %v1231 = vpack.c.b16 %v1207, %v1206
    %v1232 = vpack.c.b16 %v1209, %v1208
    %v1233 = vpack.c.b16 %v1211, %v1210
    %v1234 = vpack.c.b16 %v1213, %v1212
    %v1235 = vpack.c.b16 %v1215, %v1214
    %v1236 = vpack.c.b16 %v1217, %v1216
    %v1237 = vpack.c.b16 %v1219, %v1218
    %v1238 = vpack.c.b16 %v1221, %v1220
    %v1239 = vpack.c.b16 %v1223, %v1222
    %1256 = vmatpush.bf16.msra.mxu0 %v1231
    %1257 = vmatpush.bf16.msra.mxu0 %v1230
    %1258 = vmatpush.bf16.msra.mxu0 %v1229
    %1259 = vmatpush.bf16.msra.mxu0 %v1228
    %1260 = vmatpush.bf16.msra.mxu0 %v1227
    %1261 = vmatpush.bf16.msra.mxu0 %v1226
    %1262 = vmatpush.bf16.msra.mxu0 %v1225
    %1263 = vmatpush.bf16.msra.mxu0 %v1224
    %1264 = vmatmul.bf16.gmra.mxu0 %v1126
    %v1265 = vpop.f32.mrf.mxu0
    %v1266 = vadd.f32 %v85, %v1265
    %v1267 = vpop.f32.mrf.mxu0
    %v1268 = vadd.f32 %v85, %v1267
    %1269 = vdwg.mxu0
    %1270 = vmatpush.bf16.msra.mxu0 %v1239
    %1271 = vmatpush.bf16.msra.mxu0 %v1238
    %1272 = vmatpush.bf16.msra.mxu0 %v1237
    %1273 = vmatpush.bf16.msra.mxu0 %v1236
    %1274 = vmatpush.bf16.msra.mxu0 %v1235
    %1275 = vmatpush.bf16.msra.mxu0 %v1234
    %1276 = vmatpush.bf16.msra.mxu0 %v1233
    %1277 = vmatpush.bf16.msra.mxu0 %v1232
    %1278 = vmatmul.bf16.gmra.mxu0 %v1127
    %v1279 = vpop.f32.mrf.mxu0
    %v1280 = vadd.f32 %v1266, %v1279
    %v1281 = vpop.f32.mrf.mxu0
    %v1282 = vadd.f32 %v1268, %v1281
    %1283 = vdwg.mxu0
    %v1284 = vmax.f32 %v1280, 0.0
    %v1285 = vmax.f32 %v1282, 0.0
    %v1286 = vld [vmem:[%s7] sm:$0xf]
    %v1287 = vpack.c.bf16 %v1285, %v1284
    %1289 = vset.pattern.permute.xlu0 0
    %1290 = vperm.xlu0 %1289, %v86
    %v1291 = vpop.permute.xlu0 %1290
    %1293 = vmatpush.bf16.xpose.msra.mxu0 0
    %1294 = vmatpush.bf16.xpose.msra.mxu0 0
    %1295 = vmatpush.bf16.xpose.msra.mxu0 0
    %1296 = vmatpush.bf16.xpose.msra.mxu0 0
    %1297 = vmatpush.bf16.xpose.msra.mxu0 0
    %1298 = vmatpush.bf16.xpose.msra.mxu0 0
    %1299 = vmatpush.bf16.xpose.msra.mxu0 0
    %1300 = vmatpush.bf16.xpose.msra.mxu0 %v1287
    %1301 = vmatmul.bf16.gmra.mxu0 %v1286
    %v1302 = vpop.f32.mrf.mxu0
    %v1303 = vadd.f32 %v1291, %v1302
    %v1304 = vpop.f32.mrf.mxu0
    %1305 = vdwg.mxu0
    %vm1306 = vcmask 130048
    %1307 = vst.msk [vmem:[%s9] sm:$0xff] %vm1306, %v1303
    // Predicated region
    $region50: #{graphrec_forward.1} parent=1 // pred_check
      _
    $region51: #{graphrec_forward.1} parent=1 // pred_check_branch
      %1309 = sbr.rel (0) target = $region53
    $region52: #{graphrec_forward.1} parent=1 // pred_region
      _
    $region53: #{graphrec_forward.1} parent=1 // pred_fallthru
      _
    // Predicated region
    $region54: #{graphrec_forward.1} parent=1 // pred_check
      _
    $region55: #{graphrec_forward.1} parent=1 // pred_check_branch
      %1311 = sbr.rel (0) target = $region57
    $region56: #{graphrec_forward.1} parent=1 // pred_region
      _
    $region57: #{graphrec_forward.1} parent=1 // pred_fallthru
      _
    %1312 = vsyncpa [#allocation3], 1
    %1313 = vsyncpa [#allocation5], 1

</llo_original>
